<compile_context>
chip_gen: v7x
topology: tpu7x:2x2x1
jax: 0.10.0
libtpu: 0.0.40
codegen_flags: <defaults>
</compile_context>

<pallas_src>
import jax
import jax.numpy as jnp
from jax.experimental import pallas as pl
from jax.experimental.pallas import tpu as pltpu

LANE = 128
SUBLANE = 8


def _round_up(n, m):
    return (n + m - 1) // m * m


def _dqn_kernel(x_ref, w1_ref, b1_ref, w2_ref, b2_ref, q_ref, idx_ref, val_ref):
    # hidden = relu(x @ W1 + b1)   (bf16 MXU operands, f32 accumulation)
    x = x_ref[...].astype(jnp.bfloat16)
    h = jnp.dot(x, w1_ref[...], preferred_element_type=jnp.float32)
    h = jnp.maximum(h + b1_ref[...], 0.0)

    # q = hidden @ W2 + b2         (N = out_dim < 128; MXU pads N internally)
    q = jnp.dot(h.astype(jnp.bfloat16), w2_ref[...],
                preferred_element_type=jnp.float32)
    q = q + b2_ref[...]
    q_ref[...] = q.astype(q_ref.dtype)

    # Fused greedy-action epilogue: per-row max Q and its first-max index
    # (matches jnp.argmax tie-break because both use the same q tensor).
    row_max = jnp.max(q, axis=-1, keepdims=True)
    col = jax.lax.broadcasted_iota(jnp.int32, q.shape, dimension=1)
    idx = jnp.min(jnp.where(q == row_max, col, jnp.int32(q.shape[1])),
                  axis=-1, keepdims=True)
    idx_ref[...] = idx
    val_ref[...] = row_max
    # NOTE: idx/val stay as (tb, 1) column outputs (same pattern as the
    # flash-attention LSE output); their writeback bytes are negligible vs Q.


def prepare_params(w1, b1, w2, b2):
    """Pad the hidden dim up to a 128-lane multiple and cast weights to bf16.

    Done once at load time so per-call weight DMA is already lane-dense + bf16.
    w1: [D_in, H], b1: [H], w2: [H, O], b2: [O]  (weights pre-transposed)."""
    d_in, h = w1.shape
    o = w2.shape[1]
    h_pad = _round_up(h, LANE)

    w1p = jnp.zeros((d_in, h_pad), jnp.bfloat16).at[:, :h].set(w1.astype(jnp.bfloat16))
    b1p = jnp.zeros((1, h_pad), jnp.float32).at[:, :h].set(
        b1.astype(jnp.float32).reshape(1, -1))
    w2p = jnp.zeros((h_pad, o), jnp.bfloat16).at[:h, :].set(w2.astype(jnp.bfloat16))
    b2p = b2.astype(jnp.float32).reshape(1, o)
    return w1p, b1p, w2p, b2p


def _pick_batch_tile(batch):
    b8 = _round_up(batch, SUBLANE)
    if b8 <= 256:
        return b8  # one tile; splitting tiny batches is pure per-step overhead
    # >= 2 grid points (dual-TC v7x) while keeping tiles large (v5e/v6e), cap 1024
    return min(_round_up(pl.cdiv(b8, 2), SUBLANE), 1024)


def _vmem_limit_bytes(tb, d_in, h_pad, out_dim, x_itemsize):
    # double-buffered activation tiles + resident weights + intermediates
    acts_in = 2 * tb * d_in * x_itemsize
    acts_out = 2 * (tb * out_dim * 4 + 2 * tb * 4)
    weights = d_in * h_pad * 2 + h_pad * out_dim * 2 + (h_pad + out_dim) * 4
    inter = tb * h_pad * 4 + tb * out_dim * 4
    est = 2 * (acts_in + acts_out + weights + inter)  # single 2x safety margin
    return int(min(48 * 1024 * 1024, max(est, 4 * 1024 * 1024)))


@jax.jit
def _dqn_forward(x, w1p, b1p, w2p, b2p):
    batch, d_in = x.shape
    h_pad = w1p.shape[1]
    out_dim = w2p.shape[1]

    tb = _pick_batch_tile(batch)
    grid = (pl.cdiv(batch, tb),)

    q, idx, val = pl.pallas_call(
        _dqn_kernel,
        out_shape=(
            jax.ShapeDtypeStruct((batch, out_dim), jnp.float32),  # Q-values
            jax.ShapeDtypeStruct((batch, 1), jnp.int32),          # greedy action
            jax.ShapeDtypeStruct((batch, 1), jnp.float32),        # greedy Q-value
        ),
        grid=grid,
        in_specs=[
            pl.BlockSpec((tb, d_in), lambda i: (i, 0)),       # x: tiled over batch
            pl.BlockSpec((d_in, h_pad), lambda i: (0, 0)),    # W1: VMEM-resident
            pl.BlockSpec((1, h_pad), lambda i: (0, 0)),       # b1
            pl.BlockSpec((h_pad, out_dim), lambda i: (0, 0)), # W2: VMEM-resident
            pl.BlockSpec((1, out_dim), lambda i: (0, 0)),     # b2
        ],
        out_specs=(
            pl.BlockSpec((tb, out_dim), lambda i: (i, 0)),
            pl.BlockSpec((tb, 1), lambda i: (i, 0)),
            pl.BlockSpec((tb, 1), lambda i: (i, 0)),
        ),
        compiler_params=pltpu.CompilerParams(
            dimension_semantics=("parallel",),
            vmem_limit_bytes=_vmem_limit_bytes(tb, d_in, h_pad, out_dim,
                                               x.dtype.itemsize),
        ),
    )(x, w1p, b1p, w2p, b2p)

    return q, idx[:, 0], val[:, 0]


def dqn_forward(x, params):
    """Fused DQN forward + greedy action.

    x may be f32 or bf16 (bf16 is DMA'd as-is, halving input bytes).
    Returns (q_values [B, out_dim] f32, greedy_idx [B] int32, greedy_val [B] f32)."""
    w1p, b1p, w2p, b2p = params
    return _dqn_forward(x, w1p, b1p, w2p, b2p)


# TODO(synk): greedy_action's `valid_actions` masking (data-dependent boolean
# gather over actions) is left to plain-JAX glue on the returned Q-values.


def init_dqn_params(key, input_dim, hidden_dim, out_dim, dtype=jnp.float32):
    """Mirror torch.nn.Linear default init (uniform +/- 1/sqrt(fan_in)).
    Weights are stored already transposed to [in_features, out_features]."""
    k1, k2, k3, k4 = jax.random.split(key, 4)
    bound1 = 1.0 / jnp.sqrt(jnp.float32(input_dim))
    bound2 = 1.0 / jnp.sqrt(jnp.float32(hidden_dim))
    w1 = jax.random.uniform(k1, (input_dim, hidden_dim), dtype, -bound1, bound1)
    b1 = jax.random.uniform(k2, (hidden_dim,), dtype, -bound1, bound1)
    w2 = jax.random.uniform(k3, (hidden_dim, out_dim), dtype, -bound2, bound2)
    b2 = jax.random.uniform(k4, (out_dim,), dtype, -bound2, bound2)
    return w1, b1, w2, b2


def dqn_forward_ref(x, w1, b1, w2, b2):
    """Reference mirroring the kernel's bf16 MXU operands + f32 accumulation."""
    h = jnp.dot(x.astype(jnp.bfloat16), w1.astype(jnp.bfloat16),
                preferred_element_type=jnp.float32) + b1.astype(jnp.float32)
    h = jnp.maximum(h, 0.0)
    q = jnp.dot(h.astype(jnp.bfloat16), w2.astype(jnp.bfloat16),
                preferred_element_type=jnp.float32) + b2.astype(jnp.float32)
    return q


if __name__ == "__main__":
    batch, input_dim, hidden_dim, out_dim = 8, 32, 64, 16

    key = jax.random.PRNGKey(0)
    kx, kp = jax.random.split(key)
    x = jax.random.normal(kx, (batch, input_dim), jnp.float32)
    w1, b1, w2, b2 = init_dqn_params(kp, input_dim, hidden_dim, out_dim)

    params = prepare_params(w1, b1, w2, b2)          # pad hidden + bf16-cast once
    q, greedy_idx, greedy_val = dqn_forward(x, params)
    q, greedy_idx, greedy_val = jax.block_until_ready((q, greedy_idx, greedy_val))

    ref = dqn_forward_ref(x, w1, b1, w2, b2)
    assert q.shape == (batch, out_dim)
    assert greedy_idx.shape == (batch,) and greedy_val.shape == (batch,)
    assert jnp.allclose(q, ref, atol=1e-2, rtol=1e-2), float(jnp.max(jnp.abs(q - ref)))
    # fused greedy epilogue must be self-consistent with the returned Q-values
    assert jnp.allclose(greedy_val, jnp.max(q, axis=-1), atol=1e-6)
    assert jnp.array_equal(greedy_idx, jnp.argmax(q, axis=-1))

    print("KERNEL_OK")
</pallas_src>

<mosaic_0001>
module attributes {stable_mosaic.version = 11 : i64} {
  func.func @_dqn_kernel(%arg0: i32, %arg1: memref<8x32xf32, #tpu.memory_space<vmem>>, %arg2: memref<32x128xbf16, #tpu.memory_space<vmem>>, %arg3: memref<1x128xf32, #tpu.memory_space<vmem>>, %arg4: memref<128x16xbf16, #tpu.memory_space<vmem>>, %arg5: memref<1x16xf32, #tpu.memory_space<vmem>>, %arg6: memref<8x16xf32, #tpu.memory_space<vmem>>, %arg7: memref<8x1xi32, #tpu.memory_space<vmem>>, %arg8: memref<8x1xf32, #tpu.memory_space<vmem>>) attributes {dimension_semantics = [#tpu.dimension_semantics<parallel>], iteration_bounds = array<i64: 1>, scalar_prefetch = 0 : i64, scratch_operands = 0 : i64, tpu.core_type = #tpu.core_type<tc>, window_params = [{transform_indices = @transform_0, window_bounds = array<i64: 8, 32>}, {pipeline_mode = #tpu.pipeline_mode<synchronous>, transform_indices = @transform_1, window_bounds = array<i64: 32, 128>}, {pipeline_mode = #tpu.pipeline_mode<synchronous>, transform_indices = @transform_2, window_bounds = array<i64: 1, 128>}, {pipeline_mode = #tpu.pipeline_mode<synchronous>, transform_indices = @transform_3, window_bounds = array<i64: 128, 16>}, {pipeline_mode = #tpu.pipeline_mode<synchronous>, transform_indices = @transform_4, window_bounds = array<i64: 1, 16>}, {transform_indices = @transform_5, window_bounds = array<i64: 8, 16>}, {transform_indices = @transform_6, window_bounds = array<i64: 8, 1>}, {transform_indices = @transform_7, window_bounds = array<i64: 8, 1>}]} {
    %c0 = arith.constant 0 : index
    %c0_0 = arith.constant 0 : index
    %0 = vector.load %arg1[%c0, %c0_0] : memref<8x32xf32, #tpu.memory_space<vmem>>, vector<8x32xf32>
    %1 = arith.truncf %0 : vector<8x32xf32> to vector<8x32xbf16>
    %c0_1 = arith.constant 0 : index
    %c0_2 = arith.constant 0 : index
    %2 = vector.load %arg2[%c0_1, %c0_2] : memref<32x128xbf16, #tpu.memory_space<vmem>>, vector<32x128xbf16>
    %cst = arith.constant dense<0.000000e+00> : vector<8x128xf32>
    %3 = tpu.matmul %1, %2, %cst {dimension_numbers = #tpu.dot_dimension_numbers<[1], [0], [0], [1], [0, 0, 1, 1], [], []>} : vector<8x32xbf16>, vector<32x128xbf16>, vector<8x128xf32> -> vector<8x128xf32>
    %c0_3 = arith.constant 0 : index
    %c0_4 = arith.constant 0 : index
    %4 = vector.load %arg3[%c0_3, %c0_4] : memref<1x128xf32, #tpu.memory_space<vmem>>, vector<1x128xf32>
    %5 = vector.broadcast %4 : vector<1x128xf32> to vector<8x128xf32>
    %6 = arith.addf %3, %5 : vector<8x128xf32>
    %cst_5 = arith.constant 0.000000e+00 : f32
    %7 = vector.broadcast %cst_5 : f32 to vector<8x128xf32>
    %8 = arith.maximumf %6, %7 : vector<8x128xf32>
    %9 = arith.truncf %8 : vector<8x128xf32> to vector<8x128xbf16>
    %c0_6 = arith.constant 0 : index
    %c0_7 = arith.constant 0 : index
    %10 = vector.load %arg4[%c0_6, %c0_7] : memref<128x16xbf16, #tpu.memory_space<vmem>>, vector<128x16xbf16>
    %cst_8 = arith.constant dense<0.000000e+00> : vector<8x16xf32>
    %11 = tpu.matmul %9, %10, %cst_8 {dimension_numbers = #tpu.dot_dimension_numbers<[1], [0], [0], [1], [0, 0, 1, 1], [], []>} : vector<8x128xbf16>, vector<128x16xbf16>, vector<8x16xf32> -> vector<8x16xf32>
    %c0_9 = arith.constant 0 : index
    %c0_10 = arith.constant 0 : index
    %12 = vector.load %arg5[%c0_9, %c0_10] : memref<1x16xf32, #tpu.memory_space<vmem>>, vector<1x16xf32>
    %13 = vector.broadcast %12 : vector<1x16xf32> to vector<8x16xf32>
    %14 = arith.addf %11, %13 : vector<8x16xf32>
    %c0_11 = arith.constant 0 : index
    %c0_12 = arith.constant 0 : index
    %15 = vector.load %arg6[%c0_11, %c0_12] : memref<8x16xf32, #tpu.memory_space<vmem>>, vector<8x16xf32>
    tpu.vector_store %arg6[%c0_11, %c0_12], %14 {strides = array<i32>} : memref<8x16xf32, #tpu.memory_space<vmem>>, vector<8x16xf32>,
    %cst_13 = arith.constant dense<0xFF800000> : vector<8xf32>
    %16 = vector.multi_reduction <maximumf>, %14, %cst_13 [1] : vector<8x16xf32> to vector<8xf32>
    %17 = vector.shape_cast %16 : vector<8xf32> to vector<8x1xf32>
    %18 = tpu.iota {dimensions = array<i32: 1>} : vector<8x16xi32>
    %19 = vector.broadcast %17 : vector<8x1xf32> to vector<8x16xf32>
    %20 = arith.cmpf oeq, %14, %19 : vector<8x16xf32>
    %c16_i32 = arith.constant 16 : i32
    %21 = vector.broadcast %c16_i32 : i32 to vector<8x16xi32>
    %22 = arith.select %20, %18, %21 : vector<8x16xi1>, vector<8x16xi32>
    %cst_14 = arith.constant dense<2147483647> : vector<8xi32>
    %23 = vector.multi_reduction <minsi>, %22, %cst_14 [1] : vector<8x16xi32> to vector<8xi32>
    %24 = vector.shape_cast %23 : vector<8xi32> to vector<8x1xi32>
    %c0_15 = arith.constant 0 : index
    %c0_16 = arith.constant 0 : index
    %25 = vector.load %arg7[%c0_15, %c0_16] : memref<8x1xi32, #tpu.memory_space<vmem>>, vector<8x1xi32>
    tpu.vector_store %arg7[%c0_15, %c0_16], %24 {strides = array<i32>} : memref<8x1xi32, #tpu.memory_space<vmem>>, vector<8x1xi32>,
    %c0_17 = arith.constant 0 : index
    %c0_18 = arith.constant 0 : index
    %26 = vector.load %arg8[%c0_17, %c0_18] : memref<8x1xf32, #tpu.memory_space<vmem>>, vector<8x1xf32>
    tpu.vector_store %arg8[%c0_17, %c0_18], %17 {strides = array<i32>} : memref<8x1xf32, #tpu.memory_space<vmem>>, vector<8x1xf32>,
    return
  }
  func.func @transform_0(%arg0: i32) -> (i32, i32) {
    %c0_i32 = arith.constant 0 : i32
    %c0_i32_0 = arith.constant 0 : i32
    return %arg0, %c0_i32 : i32, i32
  }
  func.func @transform_1(%arg0: i32) -> (i32, i32) {
    %c0_i32 = arith.constant 0 : i32
    %c0_i32_0 = arith.constant 0 : i32
    %c0_i32_1 = arith.constant 0 : i32
    return %c0_i32, %c0_i32_0 : i32, i32
  }
  func.func @transform_2(%arg0: i32) -> (i32, i32) {
    %c0_i32 = arith.constant 0 : i32
    %c0_i32_0 = arith.constant 0 : i32
    %c0_i32_1 = arith.constant 0 : i32
    return %c0_i32, %c0_i32_0 : i32, i32
  }
  func.func @transform_3(%arg0: i32) -> (i32, i32) {
    %c0_i32 = arith.constant 0 : i32
    %c0_i32_0 = arith.constant 0 : i32
    %c0_i32_1 = arith.constant 0 : i32
    return %c0_i32, %c0_i32_0 : i32, i32
  }
  func.func @transform_4(%arg0: i32) -> (i32, i32) {
    %c0_i32 = arith.constant 0 : i32
    %c0_i32_0 = arith.constant 0 : i32
    %c0_i32_1 = arith.constant 0 : i32
    return %c0_i32, %c0_i32_0 : i32, i32
  }
  func.func @transform_5(%arg0: i32) -> (i32, i32) {
    %c0_i32 = arith.constant 0 : i32
    %c0_i32_0 = arith.constant 0 : i32
    return %arg0, %c0_i32 : i32, i32
  }
  func.func @transform_6(%arg0: i32) -> (i32, i32) {
    %c0_i32 = arith.constant 0 : i32
    %c0_i32_0 = arith.constant 0 : i32
    return %arg0, %c0_i32 : i32, i32
  }
  func.func @transform_7(%arg0: i32) -> (i32, i32) {
    %c0_i32 = arith.constant 0 : i32
    %c0_i32_0 = arith.constant 0 : i32
    return %arg0, %c0_i32 : i32, i32
  }
}

</mosaic_0001>

<llo_original>
// kernel: _dqn_forward.1
$region0: #{_dqn_forward.1}
  #allocation0 [shape = 'u32[]', space=smem, size = 0x4, offset = 0x4, fixed_abs, tag = 'smem constant byte address 0x4 - core index']
  #allocation1 [shape = 'u32[144,128]{1,0:T(1,128)}', space=vmem, size = 0x12000, scoped, tag = 'internal scratch']
  %s0 = inlined_call_operand.vmem [shape: f32[8,32], index: 0, kind: input, shape index: {}]
  %s1 = inlined_call_operand.vmem [shape: bf16[32,128], index: 1, kind: input, shape index: {}]
  %s2 = inlined_call_operand.vmem [shape: f32[1,128], index: 2, kind: input, shape index: {}]
  %s3 = inlined_call_operand.vmem [shape: bf16[128,16], index: 3, kind: input, shape index: {}]
  %s4 = inlined_call_operand.vmem [shape: f32[1,16], index: 4, kind: input, shape index: {}]
  %s5 = inlined_call_operand.hbm [shape: f32[8,16], index: 5, kind: output, shape index: {0}]
  %s6 = inlined_call_operand.vmem [shape: s32[8,1], index: 6, kind: output, shape index: {1}]
  %s7 = inlined_call_operand.vmem [shape: f32[8,1], index: 7, kind: output, shape index: {2}]
  %8 = xla_tuple %s5, %s6, %s7
  %s9 = sld [smem:[#allocation0]]
  $region46: #{_dqn_forward.1} parent=0
    _
  %s11 = ssub.s32 1, %s9
  %s12 = scalar_select 0, %s11, %s9
  $region1: #{_dqn_forward.1} parent=0
    #allocation2 [shape = 'u8[4096]{0}', space=vmem, size = 0x1000, scoped, tag = 'output window, operand 0, single buffered']
    #allocation3 [shape = 's32[1]{0}', space=sflag, size = 0x4, scoped, tag = 'scoped memory for _dqn_forward.1']
    %13 = vsyncpa [#allocation3], 0
    // Predicated region
    $region2: #{_dqn_forward.1} parent=1 // pred_check
      _
    $region3: #{_dqn_forward.1} parent=1 // pred_check_branch
      %15 = sbr.rel (0) target = $region5
    $region4: #{_dqn_forward.1} parent=1 // pred_region
      _
    $region5: #{_dqn_forward.1} parent=1 // pred_fallthru
      _
    // Predicated region
    $region6: #{_dqn_forward.1} parent=1 // pred_check
      _
    $region7: #{_dqn_forward.1} parent=1 // pred_check_branch
      %17 = sbr.rel (0) target = $region9
    $region8: #{_dqn_forward.1} parent=1 // pred_region
      _
    $region9: #{_dqn_forward.1} parent=1 // pred_fallthru
      _
    // Predicated region
    $region10: #{_dqn_forward.1} parent=1 // pred_check
      _
    $region11: #{_dqn_forward.1} parent=1 // pred_check_branch
      %19 = sbr.rel (0) target = $region13
    $region12: #{_dqn_forward.1} parent=1 // pred_region
      _
    $region13: #{_dqn_forward.1} parent=1 // pred_fallthru
      _
    // Predicated region
    $region14: #{_dqn_forward.1} parent=1 // pred_check
      _
    $region15: #{_dqn_forward.1} parent=1 // pred_check_branch
      %21 = sbr.rel (0) target = $region17
    $region16: #{_dqn_forward.1} parent=1 // pred_region
      _
    $region17: #{_dqn_forward.1} parent=1 // pred_fallthru
      _
    // Predicated region
    $region18: #{_dqn_forward.1} parent=1 // pred_check
      _
    $region19: #{_dqn_forward.1} parent=1 // pred_check_branch
      %23 = sbr.rel (0) target = $region21
    $region20: #{_dqn_forward.1} parent=1 // pred_region
      _
    $region21: #{_dqn_forward.1} parent=1 // pred_fallthru
      _
    %v25 = vld [vmem:[%s0] sm:$0xff]
    %v26 = vpack.c.bf16 %v25, %v25
    %v27 = vld [vmem:[%s1] sm:$0xf]
    %v28 = vld [vmem:[%s1 + $0x4] sm:$0xf]
    %v29 = vld [vmem:[%s1 + $0x8] sm:$0xf]
    %v30 = vld [vmem:[%s1 + $0xc] sm:$0xf]
    %v31 = vld [vmem:[%s2] sm:$0x1]
    %v33 = vlaneseq
    %v34 = vshrl.u32 %v33, 7
    %v35 = vsub.s32 0, %v34
    %v36 = vrot.slane %v31, %v35
    %v42 = vunpack.c.l.b16 %v27
    %v43 = vunpack.c.l.b16 %v28
    %v44 = vunpack.c.l.b16 %v29
    %v45 = vunpack.c.l.b16 %v30
    %v46 = vpack.c.b16 %v43, %v42
    %v47 = vpack.c.b16 %v45, %v44
    %vm50 = vcmask 261120
    %v52 = vsel %vm50, %v26, 0
    %54 = vmatprep.subr.bf16.mxu0 0
    %55 = vmatpush1.bf16.msra.mxu0 %v46
    %56 = vmatprep.subr.bf16.mxu0 0
    %57 = vmatpush1.bf16.msra.mxu0 %v47
    %58 = vmatprep.subr.bf16.mxu0 0
    %59 = vmatpush1.bf16.msra.mxu0 0
    %60 = vmatprep.subr.bf16.mxu0 0
    %61 = vmatpush1.bf16.msra.mxu0 0
    %62 = vmatprep.subr.bf16.mxu0 0
    %63 = vmatpush1.bf16.msra.mxu0 0
    %64 = vmatprep.subr.bf16.mxu0 0
    %65 = vmatpush1.bf16.msra.mxu0 0
    %66 = vmatprep.subr.bf16.mxu0 0
    %67 = vmatpush1.bf16.msra.mxu0 0
    %68 = vmatprep.subr.bf16.mxu0 0
    %69 = vmatpush1.bf16.msra.mxu0 0
    %70 = vmatprep.subr.bf16.mxu0 0
    %71 = vmatpush1.bf16.msra.mxu0 0
    %72 = vmatprep.subr.bf16.mxu0 0
    %73 = vmatpush1.bf16.msra.mxu0 0
    %74 = vmatprep.subr.bf16.mxu0 0
    %75 = vmatpush1.bf16.msra.mxu0 0
    %76 = vmatprep.subr.bf16.mxu0 0
    %77 = vmatpush1.bf16.msra.mxu0 0
    %78 = vmatprep.subr.bf16.mxu0 0
    %79 = vmatpush1.bf16.msra.mxu0 0
    %80 = vmatprep.subr.bf16.mxu0 0
    %81 = vmatpush1.bf16.msra.mxu0 0
    %82 = vmatprep.subr.bf16.mxu0 0
    %83 = vmatpush1.bf16.msra.mxu0 0
    %84 = vmatprep.subr.bf16.mxu0 0
    %85 = vmatpush1.bf16.msra.mxu0 0
    %86 = vmatprep.mubr.bf16.mxu0 0
    %87 = vmatmul.mubr.bf16.gmra.mrb[0].mxu0 %v52
    %v88 = vpop.f32.mrb[0].mxu0
    %v89 = vadd.f32 %v36, %v88
    %v90 = vpop.f32.mrb[0].mxu0
    %v91 = vpop.f32.mrb[0].mxu0
    %v92 = vpop.f32.mrb[0].mxu0
    %93 = vdwg.mxu0
    %v94 = vmax.f32 %v89, 0.0
    %v95 = vpack.c.bf16 %v94, %v94
    %v96 = vld [vmem:[%s3] sm:$0xf]
    %v97 = vld [vmem:[%s3 + $0x4] sm:$0xf]
    %v98 = vld [vmem:[%s3 + $0x8] sm:$0xf]
    %v99 = vld [vmem:[%s3 + $0xc] sm:$0xf]
    %v100 = vld [vmem:[%s3 + $0x10] sm:$0xf]
    %v101 = vld [vmem:[%s3 + $0x14] sm:$0xf]
    %v102 = vld [vmem:[%s3 + $0x18] sm:$0xf]
    %v103 = vld [vmem:[%s3 + $0x1c] sm:$0xf]
    %v104 = vld [vmem:[%s3 + $0x20] sm:$0xf]
    %v105 = vld [vmem:[%s3 + $0x24] sm:$0xf]
    %v106 = vld [vmem:[%s3 + $0x28] sm:$0xf]
    %v107 = vld [vmem:[%s3 + $0x2c] sm:$0xf]
    %v108 = vld [vmem:[%s3 + $0x30] sm:$0xf]
    %v109 = vld [vmem:[%s3 + $0x34] sm:$0xf]
    %v110 = vld [vmem:[%s3 + $0x38] sm:$0xf]
    %v111 = vld [vmem:[%s3 + $0x3c] sm:$0xf]
    %v112 = vld [vmem:[%s4] sm:$0x1]
    %v114 = vlaneseq
    %v115 = vshrl.u32 %v114, 7
    %v116 = vsub.s32 0, %v115
    %v117 = vrot.slane %v112, %v116
    %v135 = vunpack.c.l.b16 %v96
    %v136 = vunpack.c.l.b16 %v97
    %v137 = vunpack.c.l.b16 %v98
    %v138 = vunpack.c.l.b16 %v99
    %v139 = vunpack.c.l.b16 %v100
    %v140 = vunpack.c.l.b16 %v101
    %v141 = vunpack.c.l.b16 %v102
    %v142 = vunpack.c.l.b16 %v103
    %v143 = vunpack.c.l.b16 %v104
    %v144 = vunpack.c.l.b16 %v105
    %v145 = vunpack.c.l.b16 %v106
    %v146 = vunpack.c.l.b16 %v107
    %v147 = vunpack.c.l.b16 %v108
    %v148 = vunpack.c.l.b16 %v109
    %v149 = vunpack.c.l.b16 %v110
    %v150 = vunpack.c.l.b16 %v111
    %v151 = vpack.c.b16 %v136, %v135
    %v152 = vpack.c.b16 %v138, %v137
    %v153 = vpack.c.b16 %v140, %v139
    %v154 = vpack.c.b16 %v142, %v141
    %v155 = vpack.c.b16 %v144, %v143
    %v156 = vpack.c.b16 %v146, %v145
    %v157 = vpack.c.b16 %v148, %v147
    %v158 = vpack.c.b16 %v150, %v149
    %167 = vmatprep.subr.bf16.mxu0 0
    %168 = vmatpush1.bf16.msra.mxu0 %v151
    %169 = vmatprep.subr.bf16.mxu0 0
    %170 = vmatpush1.bf16.msra.mxu0 %v152
    %171 = vmatprep.subr.bf16.mxu0 0
    %172 = vmatpush1.bf16.msra.mxu0 %v153
    %173 = vmatprep.subr.bf16.mxu0 0
    %174 = vmatpush1.bf16.msra.mxu0 %v154
    %175 = vmatprep.subr.bf16.mxu0 0
    %176 = vmatpush1.bf16.msra.mxu0 %v155
    %177 = vmatprep.subr.bf16.mxu0 0
    %178 = vmatpush1.bf16.msra.mxu0 %v156
    %179 = vmatprep.subr.bf16.mxu0 0
    %180 = vmatpush1.bf16.msra.mxu0 %v157
    %181 = vmatprep.subr.bf16.mxu0 0
    %182 = vmatpush1.bf16.msra.mxu0 %v158
    %183 = vmatprep.subr.bf16.mxu0 0
    %184 = vmatpush1.bf16.msra.mxu0 0
    %185 = vmatprep.subr.bf16.mxu0 0
    %186 = vmatpush1.bf16.msra.mxu0 0
    %187 = vmatprep.subr.bf16.mxu0 0
    %188 = vmatpush1.bf16.msra.mxu0 0
    %189 = vmatprep.subr.bf16.mxu0 0
    %190 = vmatpush1.bf16.msra.mxu0 0
    %191 = vmatprep.subr.bf16.mxu0 0
    %192 = vmatpush1.bf16.msra.mxu0 0
    %193 = vmatprep.subr.bf16.mxu0 0
    %194 = vmatpush1.bf16.msra.mxu0 0
    %195 = vmatprep.subr.bf16.mxu0 0
    %196 = vmatpush1.bf16.msra.mxu0 0
    %197 = vmatprep.subr.bf16.mxu0 0
    %198 = vmatpush1.bf16.msra.mxu0 0
    %199 = vmatprep.mubr.bf16.mxu0 0
    %200 = vmatmul.mubr.bf16.gmra.mrb[0].mxu0 %v95
    %v201 = vpop.f32.mrb[0].mxu0
    %v202 = vadd.f32 %v117, %v201
    %v203 = vpop.f32.mrb[0].mxu0
    %v204 = vpop.f32.mrb[0].mxu0
    %v205 = vpop.f32.mrb[0].mxu0
    %206 = vdwg.mxu0
    %vm207 = vcmask 130048
    %208 = vst.msk [vmem:[#allocation2] sm:$0xff] %vm207, %v202
    %v209 = vsel %vm207, %v202, -inf
    %210 = vmax.xlane.f32.xlu0 %v209
    %v211 = vpop.xlane.xlu0 %210
    %v212 = vlaneseq
    %v213 = vand.u32 %v212, 127
    %vm214 = vcmp.eq.f32.partialorder %v202, %v211
    %v215 = vsel %vm214, %v213, 16
    %v216 = vsel %vm207, %v215, 2147483647
    %v217 = vand.u32 %v216, 65535
    %v218 = vshra.s32 %v216, 16
    %v219 = vcvt.s32.f32 %v217
    %v220 = vcvt.s32.f32 %v218
    %221 = vmin.xlane.f32.xlu0 %v220
    %v222 = vpop.xlane.xlu0 %221
    %vm223 = vcmp.eq.f32.partialorder %v220, %v222
    %v224 = vsel %vm223, %v219, inf
    %225 = vmin.xlane.f32.xlu0 %v224
    %v226 = vpop.xlane.xlu0 %225
    %v227 = vcvt.f32.s32 %v226
    %v228 = vcvt.f32.s32 %v222
    %v229 = vshll.u32 %v228, 16
    %v230 = vadd.s32 %v229, %v227
    %vm231 = vcmask 7168
    %232 = vst.msk [vmem:[%s6] sm:$0xff] %vm231, %v230
    %233 = vst.msk [vmem:[%s7] sm:$0xff] %vm231, %v211
    // Predicated region
    $region22: #{_dqn_forward.1} parent=1 // pred_check
      _
    $region23: #{_dqn_forward.1} parent=1 // pred_check_branch
      %235 = sbr.rel (0) target = $region25
    $region24: #{_dqn_forward.1} parent=1 // pred_region
      %s237 = ssub.s32 128, 128
      %238 = vsyncadd [#allocation3], %s237
      %s240 = sshll.u32 [#allocation2], 4
      %s241 = int_to_ptr.vmem [resolvable:$true] %s240
      %243 = dma.vmem_to_hbm [thread:$0]  %s241, 128, %s5, [#allocation3]
    $region25: #{_dqn_forward.1} parent=1 // pred_fallthru
      _
    // Predicated region
    $region26: #{_dqn_forward.1} parent=1 // pred_check
      _
    $region27: #{_dqn_forward.1} parent=1 // pred_check_branch
      %245 = sbr.rel (0) target = $region29
    $region28: #{_dqn_forward.1} parent=1 // pred_region
      _
    $region29: #{_dqn_forward.1} parent=1 // pred_fallthru
      _
    // Predicated region
    $region30: #{_dqn_forward.1} parent=1 // pred_check
      _
    $region31: #{_dqn_forward.1} parent=1 // pred_check_branch
      %247 = sbr.rel (0) target = $region33
    $region32: #{_dqn_forward.1} parent=1 // pred_region
      _
    $region33: #{_dqn_forward.1} parent=1 // pred_fallthru
      _
    // Predicated region
    $region34: #{_dqn_forward.1} parent=1 // pred_check
      _
    $region35: #{_dqn_forward.1} parent=1 // pred_check_branch
      %249 = sbr.rel (0) target = $region37
    $region36: #{_dqn_forward.1} parent=1 // pred_region
      %250 = dma.done [#allocation3], 128
    $region37: #{_dqn_forward.1} parent=1 // pred_fallthru
      _
    // Predicated region
    $region38: #{_dqn_forward.1} parent=1 // pred_check
      _
    $region39: #{_dqn_forward.1} parent=1 // pred_check_branch
      %252 = sbr.rel (0) target = $region41
    $region40: #{_dqn_forward.1} parent=1 // pred_region
      _
    $region41: #{_dqn_forward.1} parent=1 // pred_fallthru
      _
    // Predicated region
    $region42: #{_dqn_forward.1} parent=1 // pred_check
      _
    $region43: #{_dqn_forward.1} parent=1 // pred_check_branch
      %254 = sbr.rel (0) target = $region45
    $region44: #{_dqn_forward.1} parent=1 // pred_region
      _
    $region45: #{_dqn_forward.1} parent=1 // pred_fallthru
      _
    %255 = vsyncpa [#allocation3], 1

</llo_original>
